<compile_context>
chip_gen: v7x
topology: tpu7x:2x2x1
jax: 0.10.0
libtpu: 0.0.40
codegen_flags: <defaults>
</compile_context>

<pallas_src>
import functools

import jax
import jax.numpy as jnp
from jax import lax
from jax.experimental import pallas as pl
from jax.experimental.pallas import tpu as pltpu


def _self_attention_kernel(emb_ref, mask_ref, wqkv_ref, bqkv_ref, out_ref,
                           *, n_heads, head_size):
    # emb_ref : (1, T, C)   block for the current batch element
    # mask_ref: (1, 1, T)   per-batch key mask block
    # wqkv_ref: (C, 3C)     fused [Wq | Wk | Wv]
    # bqkv_ref: (1, 3C)     fused [bq | bk | bv]
    # out_ref : (1, T, C)
    C = n_heads * head_size
    x = emb_ref[0]                                           # (T, C) f32

    # Fused Q/K/V projection: one big MXU matmul, N = 3C.
    qkv = jnp.dot(x, wqkv_ref[...],
                  preferred_element_type=jnp.float32) + bqkv_ref[...]

    scale = jnp.float32(head_size) ** -0.5
    q = qkv[:, 0:C] * scale                                  # fold scale into q once
    k = qkv[:, C:2 * C]
    v = qkv[:, 2 * C:3 * C]

    # Additive key-mask bias computed once (finite -> no NaN if a row is all-masked).
    key_valid = mask_ref[0] > 0                              # (1, T) bool
    mask_bias = jnp.where(key_valid,
                          jnp.float32(0.0), jnp.float32(-1e30))   # (1, T)

    # Per-head attention; n_heads is small and static, slices are static views.
    head_outs = []
    for h in range(n_heads):
        lo = h * head_size
        qh = q[:, lo:lo + head_size]                         # (T, hs)
        kh = k[:, lo:lo + head_size]                         # (T, hs)
        vh = v[:, lo:lo + head_size]                         # (T, hs)

        # q @ k^T without materializing a transpose: contract on the head dim.
        scores = lax.dot_general(
            qh, kh, (((1,), (1,)), ((), ())),
            preferred_element_type=jnp.float32)              # (T, T)
        scores = scores + mask_bias                          # broadcast (1,T)->(T,T)

        # Numerically-stable softmax; normalization deferred to the (T, hs) output.
        m = jnp.max(scores, axis=-1, keepdims=True)
        e = jnp.exp(scores - m)
        denom = jnp.sum(e, axis=-1, keepdims=True)           # (T, 1)

        oh = jnp.dot(e, vh, preferred_element_type=jnp.float32)   # (T, hs)
        head_outs.append(oh * pl.reciprocal(denom, approx=True))

    # Single lane-dense (T, C) store after the head loop.
    out_ref[0] = jnp.concatenate(head_outs, axis=-1).astype(out_ref.dtype)


def bert_self_attention(emb, att_mask, params, n_heads):
    """Pallas implementation of BertSelfAttention.forward (eval mode)."""
    B, T, C = emb.shape
    head_size = C // n_heads
    wq, bq, wk, bk, wv, bv = params

    # Fuse QKV weights/biases at the wrapper (layout plumbing, not compute).
    w_qkv = jnp.concatenate([wq, wk, wv], axis=1)            # (C, 3C)
    b_qkv = jnp.concatenate([bq, bk, bv], axis=0)[None, :]   # (1, 3C)
    mask3 = att_mask.astype(jnp.int32)[:, None, :]           # (B, 1, T)

    kernel = functools.partial(
        _self_attention_kernel, n_heads=n_heads, head_size=head_size)

    # Explicit VMEM budget: double-buffered blocks + in-kernel working set,
    # with headroom; clamped so it is valid on v7x (64 MiB physical) too.
    est_bytes = 4 * (
        2 * (2 * T * C)          # emb + out blocks (double-buffered)
        + 2 * (3 * C * C + 3 * C)  # fused weight + bias blocks
        + 2 * (8 * 128)          # padded mask block
        + 4 * T * C              # qkv / q / k / v working set
        + 4 * T * T              # per-head scores / exp intermediates
    )
    vmem_limit = int(min(48 * 1024 * 1024, max(16 * 1024 * 1024, 2 * est_bytes)))

    return pl.pallas_call(
        kernel,
        out_shape=jax.ShapeDtypeStruct((B, T, C), emb.dtype),
        grid=(B,),
        in_specs=[
            pl.BlockSpec((1, T, C), lambda b: (b, 0, 0)),        # emb (per batch)
            pl.BlockSpec((1, 1, T), lambda b: (b, 0, 0)),        # att_mask (per batch)
            pl.BlockSpec((C, 3 * C), lambda b: (0, 0)),          # fused W_qkv
            pl.BlockSpec((1, 3 * C), lambda b: (0, 0)),          # fused b_qkv
        ],
        out_specs=pl.BlockSpec((1, T, C), lambda b: (b, 0, 0)),
        compiler_params=pltpu.CompilerParams(
            dimension_semantics=("parallel",),
            vmem_limit_bytes=vmem_limit),
    )(emb, mask3, w_qkv, b_qkv)


def _reference(emb, att_mask, params, n_heads):
    """Pure-JAX reference mirroring the PyTorch forward exactly."""
    B, T, C = emb.shape
    hs = C // n_heads
    wq, bq, wk, bk, wv, bv = params
    q = (emb @ wq + bq).reshape(B, T, n_heads, hs).transpose(0, 2, 1, 3)
    k = (emb @ wk + bk).reshape(B, T, n_heads, hs).transpose(0, 2, 1, 3)
    v = (emb @ wv + bv).reshape(B, T, n_heads, hs).transpose(0, 2, 1, 3)
    w = jnp.einsum("bhqd,bhkd->bhqk", q, k) * hs ** -0.5
    key_mask = (att_mask > 0)[:, None, None, :]              # (B,1,1,T)
    w = jnp.where(key_mask, w, -jnp.inf)
    w = jax.nn.softmax(w, axis=-1)
    o = jnp.einsum("bhqk,bhkd->bhqd", w, v)
    return o.transpose(0, 2, 1, 3).reshape(B, T, C)


if __name__ == "__main__":
    # Small config: B=2, T=8, emb_size=32, n_heads=4 (head_size=8)
    B, T, C, n_heads = 2, 8, 32, 4

    key = jax.random.PRNGKey(0)
    k_emb, k_wq, k_bq, k_wk, k_bk, k_wv, k_bv = jax.random.split(key, 7)

    emb = jax.random.normal(k_emb, (B, T, C), dtype=jnp.float32)
    params = (
        jax.random.normal(k_wq, (C, C), dtype=jnp.float32) * 0.05,
        jax.random.normal(k_bq, (C,), dtype=jnp.float32) * 0.05,
        jax.random.normal(k_wk, (C, C), dtype=jnp.float32) * 0.05,
        jax.random.normal(k_bk, (C,), dtype=jnp.float32) * 0.05,
        jax.random.normal(k_wv, (C, C), dtype=jnp.float32) * 0.05,
        jax.random.normal(k_bv, (C,), dtype=jnp.float32) * 0.05,
    )
    # Mask: last two key positions of batch 1 masked out, batch 0 fully valid.
    att_mask = jnp.ones((B, T), dtype=jnp.int32)
    att_mask = att_mask.at[1, T - 2:].set(0)

    out = bert_self_attention(emb, att_mask, params, n_heads)
    out = jax.block_until_ready(out)

    ref = _reference(emb, att_mask, params, n_heads)
    assert out.shape == (B, T, C)
    # Slightly looser tolerance: approx EUP reciprocal in softmax normalization.
    assert jnp.allclose(out, ref, rtol=1e-3, atol=1e-3), (
        f"max abs err = {jnp.max(jnp.abs(out - ref))}")

    print("KERNEL_OK")
</pallas_src>

<mosaic_0001>
module attributes {stable_mosaic.version = 11 : i64} {
  func.func @_self_attention_kernel(%arg0: i32, %arg1: memref<1x8x32xf32, #tpu.memory_space<vmem>>, %arg2: memref<1x1x8xi32, #tpu.memory_space<vmem>>, %arg3: memref<32x96xf32, #tpu.memory_space<vmem>>, %arg4: memref<1x96xf32, #tpu.memory_space<vmem>>, %arg5: memref<1x8x32xf32, #tpu.memory_space<vmem>>) attributes {dimension_semantics = [#tpu.dimension_semantics<parallel>], iteration_bounds = array<i64: 2>, scalar_prefetch = 0 : i64, scratch_operands = 0 : i64, tpu.core_type = #tpu.core_type<tc>, window_params = [{transform_indices = @transform_0, window_bounds = array<i64: 1, 8, 32>}, {transform_indices = @transform_1, window_bounds = array<i64: 1, 1, 8>}, {pipeline_mode = #tpu.pipeline_mode<synchronous>, transform_indices = @transform_2, window_bounds = array<i64: 32, 96>}, {pipeline_mode = #tpu.pipeline_mode<synchronous>, transform_indices = @transform_3, window_bounds = array<i64: 1, 96>}, {transform_indices = @transform_4, window_bounds = array<i64: 1, 8, 32>}]} {
    %c0 = arith.constant 0 : index
    %c0_0 = arith.constant 0 : index
    %c0_1 = arith.constant 0 : index
    %0 = vector.load %arg1[%c0, %c0_0, %c0_1] : memref<1x8x32xf32, #tpu.memory_space<vmem>>, vector<1x8x32xf32>
    %1 = vector.shape_cast %0 : vector<1x8x32xf32> to vector<8x32xf32>
    %c0_2 = arith.constant 0 : index
    %c0_3 = arith.constant 0 : index
    %2 = vector.load %arg3[%c0_2, %c0_3] : memref<32x96xf32, #tpu.memory_space<vmem>>, vector<32x96xf32>
    %cst = arith.constant dense<0.000000e+00> : vector<8x96xf32>
    %3 = tpu.matmul %1, %2, %cst {dimension_numbers = #tpu.dot_dimension_numbers<[1], [0], [0], [1], [0, 0, 1, 1], [], []>} : vector<8x32xf32>, vector<32x96xf32>, vector<8x96xf32> -> vector<8x96xf32>
    %c0_4 = arith.constant 0 : index
    %c0_5 = arith.constant 0 : index
    %4 = vector.load %arg4[%c0_4, %c0_5] : memref<1x96xf32, #tpu.memory_space<vmem>>, vector<1x96xf32>
    %5 = vector.broadcast %4 : vector<1x96xf32> to vector<8x96xf32>
    %6 = arith.addf %3, %5 : vector<8x96xf32>
    %cst_6 = arith.constant 8.000000e+00 : f32
    %cst_7 = arith.constant -5.000000e-01 : f32
    %7 = math.powf %cst_6, %cst_7 : f32
    %8 = vector.extract_strided_slice %6 {offsets = [0, 0], sizes = [8, 32], strides = [1, 1]} : vector<8x96xf32> to vector<8x32xf32>
    %9 = vector.broadcast %7 : f32 to vector<8x32xf32>
    %10 = arith.mulf %8, %9 : vector<8x32xf32>
    %11 = vector.extract_strided_slice %6 {offsets = [0, 32], sizes = [8, 32], strides = [1, 1]} : vector<8x96xf32> to vector<8x32xf32>
    %12 = vector.extract_strided_slice %6 {offsets = [0, 64], sizes = [8, 32], strides = [1, 1]} : vector<8x96xf32> to vector<8x32xf32>
    %c0_8 = arith.constant 0 : index
    %c0_9 = arith.constant 0 : index
    %c0_10 = arith.constant 0 : index
    %13 = vector.load %arg2[%c0_8, %c0_9, %c0_10] : memref<1x1x8xi32, #tpu.memory_space<vmem>>, vector<1x1x8xi32>
    %14 = vector.shape_cast %13 : vector<1x1x8xi32> to vector<1x8xi32>
    %c0_i32 = arith.constant 0 : i32
    %15 = vector.broadcast %c0_i32 : i32 to vector<1x8xi32>
    %16 = arith.cmpi sgt, %14, %15 : vector<1x8xi32>
    %cst_11 = arith.constant 0.000000e+00 : f32
    %cst_12 = arith.constant -1.000000e+30 : f32
    %17 = vector.broadcast %cst_11 : f32 to vector<1x8xf32>
    %18 = vector.broadcast %cst_12 : f32 to vector<1x8xf32>
    %19 = arith.select %16, %17, %18 : vector<1x8xi1>, vector<1x8xf32>
    %20 = vector.extract_strided_slice %10 {offsets = [0, 0], sizes = [8, 8], strides = [1, 1]} : vector<8x32xf32> to vector<8x8xf32>
    %21 = vector.extract_strided_slice %11 {offsets = [0, 0], sizes = [8, 8], strides = [1, 1]} : vector<8x32xf32> to vector<8x8xf32>
    %22 = vector.extract_strided_slice %12 {offsets = [0, 0], sizes = [8, 8], strides = [1, 1]} : vector<8x32xf32> to vector<8x8xf32>
    %cst_13 = arith.constant dense<0.000000e+00> : vector<8x8xf32>
    %23 = tpu.matmul %20, %21, %cst_13 {dimension_numbers = #tpu.dot_dimension_numbers<[1], [1], [0], [0], [0, 0, 1, 0], [], []>} : vector<8x8xf32>, vector<8x8xf32>, vector<8x8xf32> -> vector<8x8xf32>
    %24 = vector.broadcast %19 : vector<1x8xf32> to vector<8x8xf32>
    %25 = arith.addf %23, %24 : vector<8x8xf32>
    %cst_14 = arith.constant dense<0xFF800000> : vector<8xf32>
    %26 = vector.multi_reduction <maximumf>, %25, %cst_14 [1] : vector<8x8xf32> to vector<8xf32>
    %27 = vector.shape_cast %26 : vector<8xf32> to vector<8x1xf32>
    %28 = vector.broadcast %27 : vector<8x1xf32> to vector<8x8xf32>
    %29 = arith.subf %25, %28 : vector<8x8xf32>
    %30 = math.exp %29 : vector<8x8xf32>
    %cst_15 = arith.constant dense<0.000000e+00> : vector<8xf32>
    %31 = vector.multi_reduction <add>, %30, %cst_15 [1] : vector<8x8xf32> to vector<8xf32>
    %32 = vector.shape_cast %31 : vector<8xf32> to vector<8x1xf32>
    %cst_16 = arith.constant dense<0.000000e+00> : vector<8x8xf32>
    %33 = tpu.matmul %30, %22, %cst_16 {dimension_numbers = #tpu.dot_dimension_numbers<[1], [0], [0], [1], [0, 0, 1, 1], [], []>} : vector<8x8xf32>, vector<8x8xf32>, vector<8x8xf32> -> vector<8x8xf32>
    %34 = tpu.reciprocal %32 {approx = true} : vector<8x1xf32> -> vector<8x1xf32>
    %35 = vector.broadcast %34 : vector<8x1xf32> to vector<8x8xf32>
    %36 = arith.mulf %33, %35 : vector<8x8xf32>
    %37 = vector.extract_strided_slice %10 {offsets = [0, 8], sizes = [8, 8], strides = [1, 1]} : vector<8x32xf32> to vector<8x8xf32>
    %38 = vector.extract_strided_slice %11 {offsets = [0, 8], sizes = [8, 8], strides = [1, 1]} : vector<8x32xf32> to vector<8x8xf32>
    %39 = vector.extract_strided_slice %12 {offsets = [0, 8], sizes = [8, 8], strides = [1, 1]} : vector<8x32xf32> to vector<8x8xf32>
    %cst_17 = arith.constant dense<0.000000e+00> : vector<8x8xf32>
    %40 = tpu.matmul %37, %38, %cst_17 {dimension_numbers = #tpu.dot_dimension_numbers<[1], [1], [0], [0], [0, 0, 1, 0], [], []>} : vector<8x8xf32>, vector<8x8xf32>, vector<8x8xf32> -> vector<8x8xf32>
    %41 = vector.broadcast %19 : vector<1x8xf32> to vector<8x8xf32>
    %42 = arith.addf %40, %41 : vector<8x8xf32>
    %cst_18 = arith.constant dense<0xFF800000> : vector<8xf32>
    %43 = vector.multi_reduction <maximumf>, %42, %cst_18 [1] : vector<8x8xf32> to vector<8xf32>
    %44 = vector.shape_cast %43 : vector<8xf32> to vector<8x1xf32>
    %45 = vector.broadcast %44 : vector<8x1xf32> to vector<8x8xf32>
    %46 = arith.subf %42, %45 : vector<8x8xf32>
    %47 = math.exp %46 : vector<8x8xf32>
    %cst_19 = arith.constant dense<0.000000e+00> : vector<8xf32>
    %48 = vector.multi_reduction <add>, %47, %cst_19 [1] : vector<8x8xf32> to vector<8xf32>
    %49 = vector.shape_cast %48 : vector<8xf32> to vector<8x1xf32>
    %cst_20 = arith.constant dense<0.000000e+00> : vector<8x8xf32>
    %50 = tpu.matmul %47, %39, %cst_20 {dimension_numbers = #tpu.dot_dimension_numbers<[1], [0], [0], [1], [0, 0, 1, 1], [], []>} : vector<8x8xf32>, vector<8x8xf32>, vector<8x8xf32> -> vector<8x8xf32>
    %51 = tpu.reciprocal %49 {approx = true} : vector<8x1xf32> -> vector<8x1xf32>
    %52 = vector.broadcast %51 : vector<8x1xf32> to vector<8x8xf32>
    %53 = arith.mulf %50, %52 : vector<8x8xf32>
    %54 = vector.extract_strided_slice %10 {offsets = [0, 16], sizes = [8, 8], strides = [1, 1]} : vector<8x32xf32> to vector<8x8xf32>
    %55 = vector.extract_strided_slice %11 {offsets = [0, 16], sizes = [8, 8], strides = [1, 1]} : vector<8x32xf32> to vector<8x8xf32>
    %56 = vector.extract_strided_slice %12 {offsets = [0, 16], sizes = [8, 8], strides = [1, 1]} : vector<8x32xf32> to vector<8x8xf32>
    %cst_21 = arith.constant dense<0.000000e+00> : vector<8x8xf32>
    %57 = tpu.matmul %54, %55, %cst_21 {dimension_numbers = #tpu.dot_dimension_numbers<[1], [1], [0], [0], [0, 0, 1, 0], [], []>} : vector<8x8xf32>, vector<8x8xf32>, vector<8x8xf32> -> vector<8x8xf32>
    %58 = vector.broadcast %19 : vector<1x8xf32> to vector<8x8xf32>
    %59 = arith.addf %57, %58 : vector<8x8xf32>
    %cst_22 = arith.constant dense<0xFF800000> : vector<8xf32>
    %60 = vector.multi_reduction <maximumf>, %59, %cst_22 [1] : vector<8x8xf32> to vector<8xf32>
    %61 = vector.shape_cast %60 : vector<8xf32> to vector<8x1xf32>
    %62 = vector.broadcast %61 : vector<8x1xf32> to vector<8x8xf32>
    %63 = arith.subf %59, %62 : vector<8x8xf32>
    %64 = math.exp %63 : vector<8x8xf32>
    %cst_23 = arith.constant dense<0.000000e+00> : vector<8xf32>
    %65 = vector.multi_reduction <add>, %64, %cst_23 [1] : vector<8x8xf32> to vector<8xf32>
    %66 = vector.shape_cast %65 : vector<8xf32> to vector<8x1xf32>
    %cst_24 = arith.constant dense<0.000000e+00> : vector<8x8xf32>
    %67 = tpu.matmul %64, %56, %cst_24 {dimension_numbers = #tpu.dot_dimension_numbers<[1], [0], [0], [1], [0, 0, 1, 1], [], []>} : vector<8x8xf32>, vector<8x8xf32>, vector<8x8xf32> -> vector<8x8xf32>
    %68 = tpu.reciprocal %66 {approx = true} : vector<8x1xf32> -> vector<8x1xf32>
    %69 = vector.broadcast %68 : vector<8x1xf32> to vector<8x8xf32>
    %70 = arith.mulf %67, %69 : vector<8x8xf32>
    %71 = vector.extract_strided_slice %10 {offsets = [0, 24], sizes = [8, 8], strides = [1, 1]} : vector<8x32xf32> to vector<8x8xf32>
    %72 = vector.extract_strided_slice %11 {offsets = [0, 24], sizes = [8, 8], strides = [1, 1]} : vector<8x32xf32> to vector<8x8xf32>
    %73 = vector.extract_strided_slice %12 {offsets = [0, 24], sizes = [8, 8], strides = [1, 1]} : vector<8x32xf32> to vector<8x8xf32>
    %cst_25 = arith.constant dense<0.000000e+00> : vector<8x8xf32>
    %74 = tpu.matmul %71, %72, %cst_25 {dimension_numbers = #tpu.dot_dimension_numbers<[1], [1], [0], [0], [0, 0, 1, 0], [], []>} : vector<8x8xf32>, vector<8x8xf32>, vector<8x8xf32> -> vector<8x8xf32>
    %75 = vector.broadcast %19 : vector<1x8xf32> to vector<8x8xf32>
    %76 = arith.addf %74, %75 : vector<8x8xf32>
    %cst_26 = arith.constant dense<0xFF800000> : vector<8xf32>
    %77 = vector.multi_reduction <maximumf>, %76, %cst_26 [1] : vector<8x8xf32> to vector<8xf32>
    %78 = vector.shape_cast %77 : vector<8xf32> to vector<8x1xf32>
    %79 = vector.broadcast %78 : vector<8x1xf32> to vector<8x8xf32>
    %80 = arith.subf %76, %79 : vector<8x8xf32>
    %81 = math.exp %80 : vector<8x8xf32>
    %cst_27 = arith.constant dense<0.000000e+00> : vector<8xf32>
    %82 = vector.multi_reduction <add>, %81, %cst_27 [1] : vector<8x8xf32> to vector<8xf32>
    %83 = vector.shape_cast %82 : vector<8xf32> to vector<8x1xf32>
    %cst_28 = arith.constant dense<0.000000e+00> : vector<8x8xf32>
    %84 = tpu.matmul %81, %73, %cst_28 {dimension_numbers = #tpu.dot_dimension_numbers<[1], [0], [0], [1], [0, 0, 1, 1], [], []>} : vector<8x8xf32>, vector<8x8xf32>, vector<8x8xf32> -> vector<8x8xf32>
    %85 = tpu.reciprocal %83 {approx = true} : vector<8x1xf32> -> vector<8x1xf32>
    %86 = vector.broadcast %85 : vector<8x1xf32> to vector<8x8xf32>
    %87 = arith.mulf %84, %86 : vector<8x8xf32>
    %88 = tpu.concatenate %36, %53, %70, %87 in 1 : vector<8x8xf32>, vector<8x8xf32>, vector<8x8xf32>, vector<8x8xf32> -> vector<8x32xf32>
    %c0_29 = arith.constant 0 : index
    %c0_30 = arith.constant 0 : index
    %c0_31 = arith.constant 0 : index
    %89 = vector.load %arg5[%c0_29, %c0_30, %c0_31] : memref<1x8x32xf32, #tpu.memory_space<vmem>>, vector<1x8x32xf32>
    %90 = vector.shape_cast %89 : vector<1x8x32xf32> to vector<8x32xf32>
    %91 = vector.shape_cast %88 : vector<8x32xf32> to vector<1x8x32xf32>
    tpu.vector_store %arg5[%c0_29, %c0_30, %c0_31], %91 {strides = array<i32>} : memref<1x8x32xf32, #tpu.memory_space<vmem>>, vector<1x8x32xf32>,
    return
  }
  func.func @transform_0(%arg0: i32) -> (i32, i32, i32) {
    %c0_i32 = arith.constant 0 : i32
    %c0_i32_0 = arith.constant 0 : i32
    %c0_i32_1 = arith.constant 0 : i32
    return %arg0, %c0_i32, %c0_i32_0 : i32, i32, i32
  }
  func.func @transform_1(%arg0: i32) -> (i32, i32, i32) {
    %c0_i32 = arith.constant 0 : i32
    %c0_i32_0 = arith.constant 0 : i32
    %c0_i32_1 = arith.constant 0 : i32
    return %arg0, %c0_i32, %c0_i32_0 : i32, i32, i32
  }
  func.func @transform_2(%arg0: i32) -> (i32, i32) {
    %c0_i32 = arith.constant 0 : i32
    %c0_i32_0 = arith.constant 0 : i32
    %c0_i32_1 = arith.constant 0 : i32
    return %c0_i32, %c0_i32_0 : i32, i32
  }
  func.func @transform_3(%arg0: i32) -> (i32, i32) {
    %c0_i32 = arith.constant 0 : i32
    %c0_i32_0 = arith.constant 0 : i32
    %c0_i32_1 = arith.constant 0 : i32
    return %c0_i32, %c0_i32_0 : i32, i32
  }
  func.func @transform_4(%arg0: i32) -> (i32, i32, i32) {
    %c0_i32 = arith.constant 0 : i32
    %c0_i32_0 = arith.constant 0 : i32
    %c0_i32_1 = arith.constant 0 : i32
    return %arg0, %c0_i32, %c0_i32_0 : i32, i32, i32
  }
}

</mosaic_0001>

<llo_original>
// kernel: tpu_custom_call.1
$region0: #{tpu_custom_call.1}
  #allocation0 [shape = 'u32[]', space=smem, size = 0x4, offset = 0x4, fixed_abs, tag = 'smem constant byte address 0x4 - core index']
  #allocation1 [shape = 'u32[144,128]{1,0:T(1,128)}', space=vmem, size = 0x12000, scoped, tag = 'internal scratch']
  %s0 = inlined_call_operand.hbm [shape: f32[2,8,32], index: 0, kind: input, shape index: {}]
  %s1 = inlined_call_operand.vmem [shape: s32[2,1,8], index: 1, kind: input, shape index: {}]
  %s2 = inlined_call_operand.hbm [shape: f32[32,96], index: 2, kind: input, shape index: {}]
  %s3 = inlined_call_operand.vmem [shape: f32[1,96], index: 3, kind: input, shape index: {}]
  %s4 = inlined_call_operand.hbm [shape: f32[2,8,32], index: 4, kind: output, shape index: {}]
  %s5 = sld [smem:[#allocation0]]
  $region57: #{tpu_custom_call.1} parent=0
    _
  %s7 = ssub.s32 1, %s5
  %s8 = scalar_select 0, %s7, %s5
  $region1: #{tpu_custom_call.1} parent=0
    #allocation2 [shape = 'u8[8192]{0}', space=vmem, size = 0x2000, scoped, tag = 'input window, operand 0']
    #allocation3 [shape = 's32[2]{0}', space=sflag, size = 0x8, scoped, tag = 'scoped memory for tpu_custom_call.1']
    #allocation4 [shape = 's32[2]{0}', space=sflag, size = 0x8, scoped, tag = 'scoped memory for tpu_custom_call.1']
    #allocation5 [shape = 'u8[16384]{0}', space=vmem, size = 0x4000, scoped, tag = 'input window, operand 2, single buffered']
    #allocation6 [shape = 's32[1]{0}', space=sflag, size = 0x4, scoped, tag = 'scoped memory for tpu_custom_call.1']
    #allocation7 [shape = 'u8[8192]{0}', space=vmem, size = 0x2000, scoped, tag = 'output window, operand 0']
    %9 = vsyncpa [#allocation3], 0
    %s10 = scalar_lea.sflag [#allocation3], 1
    %11 = vsyncpa %s10, 0
    %12 = vsyncpa [#allocation6], 0
    %13 = vsyncpa [#allocation4], 0
    %s14 = scalar_lea.sflag [#allocation4], 1
    %15 = vsyncpa %s14, 0
    loop: start=0, step=1, limit=4
    $region2: #{tpu_custom_call.1} parent=1 // loop_pre_header
      _
    $region3: #{tpu_custom_call.1} parent=1 // loop_header
      %s17 = sphi 0, %s21
      %p18 = scmp.ge.s32.totalorder %s17, 4
      %s27 = sphi 0, %s29
      %s30 = sphi 0, %s27
      %s31 = sphi 0, %s30
      %s47 = sphi 0, %s31
      %s53 = sphi 0, %s55
      %s56 = sphi 0, %s53
      %s57 = sphi 0, %s56
      %s73 = sphi 0, %s57
      %s77 = sphi 0, %s77
      %s79 = sphi 0, %s77
      %s80 = sphi 0, %s79
      %s94 = sphi 0, %s80
      %s98 = sphi 0, %s98
      %s100 = sphi 0, %s98
      %s101 = sphi 0, %s100
      %s115 = sphi 0, %s101
      %s121 = sphi 0, %s123
      %s124 = sphi 0, %s121
      %s125 = sphi 0, %s124
      %s141 = sphi 0, %s125
    $region4: #{tpu_custom_call.1} parent=1 // loop_header_branch
      %20 = sbr.rel (%p18) target = $region8
    $region5: #{tpu_custom_call.1} parent=1 // loop_body
      %s22 = ssub.s32 %s17, 1
      %s23 = ssub.s32 %s17, 2
      %s24 = sadd.s32 %s17, 1
      %s25 = ssub.s32 %s17, %s24
      %p26 = scmp.eq.s32.totalorder %s25, 0
      %s28 = sadd.s32 %s27, 1
      %s29 = scalar_select %p26, %s27, %s28
      %p32 = pneg %p26
      %p33 = scmp.eq.s32.totalorder %s17, 1
      %p34 = por %p32, %p33
      %p35 = scmp.ne.s32.totalorder %s27, %s30
      %p36 = scmp.eq.s32.totalorder %s17, 0
      %p37 = por %p35, %p36
      %p38 = scmp.ne.s32.totalorder %s27, %s30
      %p39 = scmp.eq.s32.totalorder %s22, 1
      %p40 = por %p38, %p39
      %p41 = scmp.ne.s32.totalorder %s30, %s31
      %p42 = scmp.eq.s32.totalorder %s22, 0
      %p43 = por %p41, %p42
      %p44 = scmp.ne.s32.totalorder %s30, %s31
      %p45 = scmp.eq.s32.totalorder %s23, 1
      %p46 = por %p44, %p45
      %p48 = scmp.ne.s32.totalorder %s31, %s47
      %p49 = scmp.eq.s32.totalorder %s23, 0
      %p50 = por %p48, %p49
      %s51 = ssub.s32 %s17, %s24
      %p52 = scmp.eq.s32.totalorder %s51, 0
      %s54 = sadd.s32 %s53, 1
      %s55 = scalar_select %p52, %s53, %s54
      %p58 = pneg %p52
      %p59 = scmp.eq.s32.totalorder %s17, 1
      %p60 = por %p58, %p59
      %p61 = scmp.ne.s32.totalorder %s53, %s56
      %p62 = scmp.eq.s32.totalorder %s17, 0
      %p63 = por %p61, %p62
      %p64 = scmp.ne.s32.totalorder %s53, %s56
      %p65 = scmp.eq.s32.totalorder %s22, 1
      %p66 = por %p64, %p65
      %p67 = scmp.ne.s32.totalorder %s56, %s57
      %p68 = scmp.eq.s32.totalorder %s22, 0
      %p69 = por %p67, %p68
      %p70 = scmp.ne.s32.totalorder %s56, %s57
      %p71 = scmp.eq.s32.totalorder %s23, 1
      %p72 = por %p70, %p71
      %p74 = scmp.ne.s32.totalorder %s57, %s73
      %p75 = scmp.eq.s32.totalorder %s23, 0
      %p76 = por %p74, %p75
      %s78 = sadd.s32 %s77, 1
      %p81 = scmp.eq.s32.totalorder %s17, 1
      %p82 = scmp.ne.s32.totalorder %s77, %s79
      %p83 = scmp.eq.s32.totalorder %s17, 0
      %p84 = por %p82, %p83
      %p85 = scmp.ne.s32.totalorder %s77, %s79
      %p86 = scmp.eq.s32.totalorder %s22, 1
      %p87 = por %p85, %p86
      %p88 = scmp.ne.s32.totalorder %s79, %s80
      %p89 = scmp.eq.s32.totalorder %s22, 0
      %p90 = por %p88, %p89
      %p91 = scmp.ne.s32.totalorder %s79, %s80
      %p92 = scmp.eq.s32.totalorder %s23, 1
      %p93 = por %p91, %p92
      %p95 = scmp.ne.s32.totalorder %s80, %s94
      %p96 = scmp.eq.s32.totalorder %s23, 0
      %p97 = por %p95, %p96
      %s99 = sadd.s32 %s98, 1
      %p102 = scmp.eq.s32.totalorder %s17, 1
      %p103 = scmp.ne.s32.totalorder %s98, %s100
      %p104 = scmp.eq.s32.totalorder %s17, 0
      %p105 = por %p103, %p104
      %p106 = scmp.ne.s32.totalorder %s98, %s100
      %p107 = scmp.eq.s32.totalorder %s22, 1
      %p108 = por %p106, %p107
      %p109 = scmp.ne.s32.totalorder %s100, %s101
      %p110 = scmp.eq.s32.totalorder %s22, 0
      %p111 = por %p109, %p110
      %p112 = scmp.ne.s32.totalorder %s100, %s101
      %p113 = scmp.eq.s32.totalorder %s23, 1
      %p114 = por %p112, %p113
      %p116 = scmp.ne.s32.totalorder %s101, %s115
      %p117 = scmp.eq.s32.totalorder %s23, 0
      %p118 = por %p116, %p117
      %s119 = ssub.s32 %s17, %s24
      %p120 = scmp.eq.s32.totalorder %s119, 0
      %s122 = sadd.s32 %s121, 1
      %s123 = scalar_select %p120, %s121, %s122
      %p126 = pneg %p120
      %p127 = scmp.eq.s32.totalorder %s17, 1
      %p128 = por %p126, %p127
      %p129 = scmp.ne.s32.totalorder %s121, %s124
      %p130 = scmp.eq.s32.totalorder %s17, 0
      %p131 = por %p129, %p130
      %p132 = scmp.ne.s32.totalorder %s121, %s124
      %p133 = scmp.eq.s32.totalorder %s22, 1
      %p134 = por %p132, %p133
      %p135 = scmp.ne.s32.totalorder %s124, %s125
      %p136 = scmp.eq.s32.totalorder %s22, 0
      %p137 = por %p135, %p136
      %p138 = scmp.ne.s32.totalorder %s124, %s125
      %p139 = scmp.eq.s32.totalorder %s23, 1
      %p140 = por %p138, %p139
      %p142 = scmp.ne.s32.totalorder %s125, %s141
      %p143 = scmp.eq.s32.totalorder %s23, 0
      %p144 = por %p142, %p143
      %p145 = scmp.le.s32.totalorder 1, %s17
      %p146 = scmp.lt.s32.totalorder %s17, 3
      %p147 = pnand %p145, %p146
      %p148 = pneg %p147
      // Predicated region
      $region9: #{tpu_custom_call.1} parent=5 // pred_check
        _
      $region10: #{tpu_custom_call.1} parent=5 // pred_check_branch
        %150 = sbr.rel (%p147) target = $region12
      $region11: #{tpu_custom_call.1} parent=5 // pred_region
        %s151 = ssub.s32 %s17, 1
        // Predicated region
        $region13: #{tpu_custom_call.1} parent=11 // pred_check
          %p152 = pneg %p90
        $region14: #{tpu_custom_call.1} parent=11 // pred_check_branch
          %154 = sbr.rel (%p152) target = $region16
        $region15: #{tpu_custom_call.1} parent=11 // pred_region
          %s156 = ssub.s32 512, 512
          %157 = vsyncadd [#allocation6], %s156
          %s158 = sshll.u32 [#allocation5], 4
          %s159 = int_to_ptr.vmem [resolvable:$true] %s158
          %164 = dma.hbm_to_vmem [thread:$0]  %s2, 512, %s159, [#allocation6], 128, 128, 8
        $region16: #{tpu_custom_call.1} parent=11 // pred_fallthru
          _
        // Predicated region
        $region17: #{tpu_custom_call.1} parent=11 // pred_check
          %p165 = pneg %p111
        $region18: #{tpu_custom_call.1} parent=11 // pred_check_branch
          %167 = sbr.rel (%p165) target = $region20
        $region19: #{tpu_custom_call.1} parent=11 // pred_region
          _
        $region20: #{tpu_custom_call.1} parent=11 // pred_fallthru
          _
      $region12: #{tpu_custom_call.1} parent=5 // pred_fallthru
        _
      %p168 = scmp.lt.s32.totalorder %s17, 2
      // Predicated region
      $region21: #{tpu_custom_call.1} parent=5 // pred_check
        %p169 = pneg %p168
      $region22: #{tpu_custom_call.1} parent=5 // pred_check_branch
        %171 = sbr.rel (%p169) target = $region24
      $region23: #{tpu_custom_call.1} parent=5 // pred_region
        // Predicated region
        $region25: #{tpu_custom_call.1} parent=23 // pred_check
          %p172 = pneg %p37
        $region26: #{tpu_custom_call.1} parent=23 // pred_check_branch
          %174 = sbr.rel (%p172) target = $region28
        $region27: #{tpu_custom_call.1} parent=23 // pred_region
          %s175 = sand.u32 %s27, 1
          %s176 = scalar_lea.sflag [#allocation3], %s175
          %s177 = sand.u32 %s27, 1
          %s178 = smul.addr %s177, 8
          %s179 = scalar_lea.vmem [#allocation2], %s178
          %s181 = ssub.s32 128, 128
          %182 = vsyncadd %s176, %s181
          %s183 = smul.addr %s17, 128
          %s184 = scalar_lea.hbm %s0, %s183
          %s186 = sshll.u32 %s179, 4
          %s187 = int_to_ptr.vmem [resolvable:$true] %s186
          %189 = dma.hbm_to_vmem [thread:$0]  %s184, 128, %s187, %s176
        $region28: #{tpu_custom_call.1} parent=23 // pred_fallthru
          _
        // Predicated region
        $region29: #{tpu_custom_call.1} parent=23 // pred_check
          %p190 = pneg %p63
        $region30: #{tpu_custom_call.1} parent=23 // pred_check_branch
          %192 = sbr.rel (%p190) target = $region32
        $region31: #{tpu_custom_call.1} parent=23 // pred_region
          %p193 = scmp.lt.s32.totalorder %s17, 1
          %s194 = scalar_select %p193, %s17, 1
          %s195 = scalar_lea.vmem %s1, %s194
        $region32: #{tpu_custom_call.1} parent=23 // pred_fallthru
          _
      $region24: #{tpu_custom_call.1} parent=5 // pred_fallthru
        _
      %p196 = scmp.le.s32.totalorder 1, %s17
      %p197 = scmp.lt.s32.totalorder %s17, 3
      %p198 = pnand %p196, %p197
      %p199 = pneg %p198
      // Predicated region
      $region33: #{tpu_custom_call.1} parent=5 // pred_check
        _
      $region34: #{tpu_custom_call.1} parent=5 // pred_check_branch
        %201 = sbr.rel (%p198) target = $region36
      $region35: #{tpu_custom_call.1} parent=5 // pred_region
        %s202 = ssub.s32 %s17, 1
        %s203 = sand.u32 %s30, 1
        %s204 = scalar_lea.sflag [#allocation3], %s203
        %s205 = sand.u32 %s30, 1
        %s206 = smul.addr %s205, 8
        %s207 = scalar_lea.vmem [#allocation2], %s206
        // Predicated region
        $region37: #{tpu_custom_call.1} parent=35 // pred_check
          %p208 = pneg %p43
        $region38: #{tpu_custom_call.1} parent=35 // pred_check_branch
          %210 = sbr.rel (%p208) target = $region40
        $region39: #{tpu_custom_call.1} parent=35 // pred_region
          %211 = dma.done %s204, 128
        $region40: #{tpu_custom_call.1} parent=35 // pred_fallthru
          _
        // Predicated region
        $region41: #{tpu_custom_call.1} parent=35 // pred_check
          %p212 = pneg %p90
        $region42: #{tpu_custom_call.1} parent=35 // pred_check_branch
          %214 = sbr.rel (%p212) target = $region44
        $region43: #{tpu_custom_call.1} parent=35 // pred_region
          %215 = dma.done [#allocation6], 512
        $region44: #{tpu_custom_call.1} parent=35 // pred_fallthru
          _
        %s216 = sand.u32 %s30, 1
        %s217 = scalar_lea.sflag [#allocation3], %s216
        %s218 = sand.u32 %s30, 1
        %s219 = smul.addr %s218, 8
        %s220 = scalar_lea.vmem [#allocation2], %s219
        %p221 = pneg %p43
        %p222 = pneg %p40
        %p223 = scmp.lt.s32.totalorder %s22, 1
        %s224 = scalar_select %p223, %s22, 1
        %s225 = scalar_lea.vmem %s1, %s224
        %p226 = pneg %p69
        %p227 = pneg %p66
        %p228 = pneg %p90
        %p229 = pneg %p87
        %p230 = pneg %p111
        %p231 = pneg %p108
        %p232 = pneg %p137
        %p233 = pneg %p134
        %s234 = sand.u32 %s124, 1
        %s235 = scalar_lea.sflag [#allocation4], %s234
        %s236 = sand.u32 %s124, 1
        %s237 = smul.addr %s236, 8
        %s238 = scalar_lea.vmem [#allocation7], %s237
        %p239 = scmp.lt.s32.totalorder %s22, 1
        %s240 = scalar_select %p239, %s22, 1
        %s241 = scalar_lea.vmem %s1, %s240
        %v242 = vld [vmem:[%s207] sm:$0xff]
        %v243 = vld [vmem:[#allocation5] sm:$0xff]
        %v244 = vld [vmem:[#allocation5 + $0x8] sm:$0xff]
        %v245 = vld [vmem:[#allocation5 + $0x10] sm:$0xff]
        %v246 = vld [vmem:[#allocation5 + $0x18] sm:$0xff]
        %v247 = vld [vmem:[%s3] sm:$0x1]
        %v249 = vlaneseq
        %v250 = vshrl.u32 %v249, 7
        %v251 = vsub.s32 0, %v250
        %v252 = vrot.slane %v247, %v251
        %vm254 = vcmask 261120
        %v256 = vsel %vm254, %v242, 0
        %258 = vmatprep.subr.mxu0 0.0
        %259 = vmatpush1.msra.mxu0 %v243
        %260 = vmatprep.subr.mxu0 0.0
        %261 = vmatpush1.msra.mxu0 %v244
        %262 = vmatprep.subr.mxu0 0.0
        %263 = vmatpush1.msra.mxu0 %v245
        %264 = vmatprep.subr.mxu0 0.0
        %265 = vmatpush1.msra.mxu0 %v246
        %266 = vmatprep.subr.mxu0 0.0
        %267 = vmatpush1.msra.mxu0 0.0
        %268 = vmatprep.subr.mxu0 0.0
        %269 = vmatpush1.msra.mxu0 0.0
        %270 = vmatprep.subr.mxu0 0.0
        %271 = vmatpush1.msra.mxu0 0.0
        %272 = vmatprep.subr.mxu0 0.0
        %273 = vmatpush1.msra.mxu0 0.0
        %274 = vmatprep.subr.mxu0 0.0
        %275 = vmatpush1.msra.mxu0 0.0
        %276 = vmatprep.subr.mxu0 0.0
        %277 = vmatpush1.msra.mxu0 0.0
        %278 = vmatprep.subr.mxu0 0.0
        %279 = vmatpush1.msra.mxu0 0.0
        %280 = vmatprep.subr.mxu0 0.0
        %281 = vmatpush1.msra.mxu0 0.0
        %282 = vmatprep.subr.mxu0 0.0
        %283 = vmatpush1.msra.mxu0 0.0
        %284 = vmatprep.subr.mxu0 0.0
        %285 = vmatpush1.msra.mxu0 0.0
        %286 = vmatprep.subr.mxu0 0.0
        %287 = vmatpush1.msra.mxu0 0.0
        %288 = vmatprep.subr.mxu0 0.0
        %289 = vmatpush1.msra.mxu0 0.0
        %290 = vmatprep.subr.mxu0 0.0
        %291 = vmatpush1.msra.mxu0 0.0
        %292 = vmatprep.subr.mxu0 0.0
        %293 = vmatpush1.msra.mxu0 0.0
        %294 = vmatprep.subr.mxu0 0.0
        %295 = vmatpush1.msra.mxu0 0.0
        %296 = vmatprep.subr.mxu0 0.0
        %297 = vmatpush1.msra.mxu0 0.0
        %298 = vmatprep.subr.mxu0 0.0
        %299 = vmatpush1.msra.mxu0 0.0
        %300 = vmatprep.subr.mxu0 0.0
        %301 = vmatpush1.msra.mxu0 0.0
        %302 = vmatprep.subr.mxu0 0.0
        %303 = vmatpush1.msra.mxu0 0.0
        %304 = vmatprep.subr.mxu0 0.0
        %305 = vmatpush1.msra.mxu0 0.0
        %306 = vmatprep.subr.mxu0 0.0
        %307 = vmatpush1.msra.mxu0 0.0
        %308 = vmatprep.subr.mxu0 0.0
        %309 = vmatpush1.msra.mxu0 0.0
        %310 = vmatprep.subr.mxu0 0.0
        %311 = vmatpush1.msra.mxu0 0.0
        %312 = vmatprep.subr.mxu0 0.0
        %313 = vmatpush1.msra.mxu0 0.0
        %314 = vmatprep.subr.mxu0 0.0
        %315 = vmatpush1.msra.mxu0 0.0
        %316 = vmatprep.subr.mxu0 0.0
        %317 = vmatpush1.msra.mxu0 0.0
        %318 = vmatprep.subr.mxu0 0.0
        %319 = vmatpush1.msra.mxu0 0.0
        %320 = vmatprep.subr.mxu0 0.0
        %321 = vmatpush1.msra.mxu0 0.0
        %322 = vmatprep.mubr.f32.mxu0 0.0
        %323 = vmatmul.mubr.f32.gmra.mrb[0].mxu0 %v256
        %v324 = vpop.f32.mrb[0].mxu0
        %v325 = vadd.f32 %v252, %v324
        %v326 = vpop.f32.mrb[0].mxu0
        %327 = vdwg.mxu0
        %v328 = vmul.f32 %v325, 0.35355338
        %v329 = vld [vmem:[%s241] sm:$0x1]
        %vm330 = vcmp.gt.s32.totalorder %v329, 0
        %v331 = vsel %vm330, 0.0, -1e+30
        %v333 = vlaneseq
        %v334 = vshrl.u32 %v333, 7
        %v335 = vsub.s32 0, %v334
        %v336 = vrot.slane %v331, %v335
        %339 = vrot.lane.b32.xlu0 %v325, 96
        %v340 = vpop.permute.xlu0 %339
        %vm341 = vcmask 64512
        %v343 = vsel %vm341, %v328, 0
        %v345 = vsel %vm341, %v340, 0
        %347 = vmatprep.subr.mxu0 0.0
        %348 = vmatpush1.xpose.msra.mxu0 %v345
        %349 = vmatprep.subr.mxu0 0.0
        %350 = vmatpush1.xpose.msra.mxu0 0.0
        %351 = vmatprep.subr.mxu0 0.0
        %352 = vmatpush1.xpose.msra.mxu0 0.0
        %353 = vmatprep.subr.mxu0 0.0
        %354 = vmatpush1.xpose.msra.mxu0 0.0
        %355 = vmatprep.subr.mxu0 0.0
        %356 = vmatpush1.xpose.msra.mxu0 0.0
        %357 = vmatprep.subr.mxu0 0.0
        %358 = vmatpush1.xpose.msra.mxu0 0.0
        %359 = vmatprep.subr.mxu0 0.0
        %360 = vmatpush1.xpose.msra.mxu0 0.0
        %361 = vmatprep.subr.mxu0 0.0
        %362 = vmatpush1.xpose.msra.mxu0 0.0
        %363 = vmatprep.subr.mxu0 0.0
        %364 = vmatpush1.xpose.msra.mxu0 0.0
        %365 = vmatprep.subr.mxu0 0.0
        %366 = vmatpush1.xpose.msra.mxu0 0.0
        %367 = vmatprep.subr.mxu0 0.0
        %368 = vmatpush1.xpose.msra.mxu0 0.0
        %369 = vmatprep.subr.mxu0 0.0
        %370 = vmatpush1.xpose.msra.mxu0 0.0
        %371 = vmatprep.subr.mxu0 0.0
        %372 = vmatpush1.xpose.msra.mxu0 0.0
        %373 = vmatprep.subr.mxu0 0.0
        %374 = vmatpush1.xpose.msra.mxu0 0.0
        %375 = vmatprep.subr.mxu0 0.0
        %376 = vmatpush1.xpose.msra.mxu0 0.0
        %377 = vmatprep.subr.mxu0 0.0
        %378 = vmatpush1.xpose.msra.mxu0 0.0
        %379 = vmatprep.subr.mxu0 0.0
        %380 = vmatpush1.xpose.msra.mxu0 0.0
        %381 = vmatprep.subr.mxu0 0.0
        %382 = vmatpush1.xpose.msra.mxu0 0.0
        %383 = vmatprep.subr.mxu0 0.0
        %384 = vmatpush1.xpose.msra.mxu0 0.0
        %385 = vmatprep.subr.mxu0 0.0
        %386 = vmatpush1.xpose.msra.mxu0 0.0
        %387 = vmatprep.subr.mxu0 0.0
        %388 = vmatpush1.xpose.msra.mxu0 0.0
        %389 = vmatprep.subr.mxu0 0.0
        %390 = vmatpush1.xpose.msra.mxu0 0.0
        %391 = vmatprep.subr.mxu0 0.0
        %392 = vmatpush1.xpose.msra.mxu0 0.0
        %393 = vmatprep.subr.mxu0 0.0
        %394 = vmatpush1.xpose.msra.mxu0 0.0
        %395 = vmatprep.subr.mxu0 0.0
        %396 = vmatpush1.xpose.msra.mxu0 0.0
        %397 = vmatprep.subr.mxu0 0.0
        %398 = vmatpush1.xpose.msra.mxu0 0.0
        %399 = vmatprep.subr.mxu0 0.0
        %400 = vmatpush1.xpose.msra.mxu0 0.0
        %401 = vmatprep.subr.mxu0 0.0
        %402 = vmatpush1.xpose.msra.mxu0 0.0
        %403 = vmatprep.subr.mxu0 0.0
        %404 = vmatpush1.xpose.msra.mxu0 0.0
        %405 = vmatprep.subr.mxu0 0.0
        %406 = vmatpush1.xpose.msra.mxu0 0.0
        %407 = vmatprep.subr.mxu0 0.0
        %408 = vmatpush1.xpose.msra.mxu0 0.0
        %409 = vmatprep.subr.mxu0 0.0
        %410 = vmatpush1.xpose.msra.mxu0 0.0
        %411 = vmatprep.mubr.f32.mxu0 0.0
        %412 = vmatmul.mubr.f32.gmra.mrb[0].mxu0 %v343
        %v413 = vpop.f32.mrb[0].mxu0
        %v414 = vadd.f32 %v336, %v413
        %v415 = vpop.f32.mrb[0].mxu0
        %416 = vdwg.mxu0
        %v417 = vsel %vm341, %v414, -inf
        %418 = vmax.xlane.f32.xlu0 %v417
        %v419 = vpop.xlane.xlu0 %418
        %v420 = vsub.f32 %v414, %v419
        %v421 = vmul.f32 %v420, 1.442695
        %v422 = vpow.pop %v421
        %v423 = vsel %vm341, %v422, 0.0
        %424 = vadd.xlane.f32.xlu0 %v423
        %v425 = vpop.xlane.xlu0 %424
        %426 = vrot.lane.b32.xlu0 %v325, 64
        %v427 = vpop.permute.xlu0 %426
        %v430 = vsel %vm341, %v422, 0
        %432 = vmatprep.subr.mxu0 0.0
        %433 = vmatpush1.msra.mxu0 %v427
        %434 = vmatprep.subr.mxu0 0.0
        %435 = vmatpush1.msra.mxu0 0.0
        %436 = vmatprep.subr.mxu0 0.0
        %437 = vmatpush1.msra.mxu0 0.0
        %438 = vmatprep.subr.mxu0 0.0
        %439 = vmatpush1.msra.mxu0 0.0
        %440 = vmatprep.subr.mxu0 0.0
        %441 = vmatpush1.msra.mxu0 0.0
        %442 = vmatprep.subr.mxu0 0.0
        %443 = vmatpush1.msra.mxu0 0.0
        %444 = vmatprep.subr.mxu0 0.0
        %445 = vmatpush1.msra.mxu0 0.0
        %446 = vmatprep.subr.mxu0 0.0
        %447 = vmatpush1.msra.mxu0 0.0
        %448 = vmatprep.subr.mxu0 0.0
        %449 = vmatpush1.msra.mxu0 0.0
        %450 = vmatprep.subr.mxu0 0.0
        %451 = vmatpush1.msra.mxu0 0.0
        %452 = vmatprep.subr.mxu0 0.0
        %453 = vmatpush1.msra.mxu0 0.0
        %454 = vmatprep.subr.mxu0 0.0
        %455 = vmatpush1.msra.mxu0 0.0
        %456 = vmatprep.subr.mxu0 0.0
        %457 = vmatpush1.msra.mxu0 0.0
        %458 = vmatprep.subr.mxu0 0.0
        %459 = vmatpush1.msra.mxu0 0.0
        %460 = vmatprep.subr.mxu0 0.0
        %461 = vmatpush1.msra.mxu0 0.0
        %462 = vmatprep.subr.mxu0 0.0
        %463 = vmatpush1.msra.mxu0 0.0
        %464 = vmatprep.subr.mxu0 0.0
        %465 = vmatpush1.msra.mxu0 0.0
        %466 = vmatprep.subr.mxu0 0.0
        %467 = vmatpush1.msra.mxu0 0.0
        %468 = vmatprep.subr.mxu0 0.0
        %469 = vmatpush1.msra.mxu0 0.0
        %470 = vmatprep.subr.mxu0 0.0
        %471 = vmatpush1.msra.mxu0 0.0
        %472 = vmatprep.subr.mxu0 0.0
        %473 = vmatpush1.msra.mxu0 0.0
        %474 = vmatprep.subr.mxu0 0.0
        %475 = vmatpush1.msra.mxu0 0.0
        %476 = vmatprep.subr.mxu0 0.0
        %477 = vmatpush1.msra.mxu0 0.0
        %478 = vmatprep.subr.mxu0 0.0
        %479 = vmatpush1.msra.mxu0 0.0
        %480 = vmatprep.subr.mxu0 0.0
        %481 = vmatpush1.msra.mxu0 0.0
        %482 = vmatprep.subr.mxu0 0.0
        %483 = vmatpush1.msra.mxu0 0.0
        %484 = vmatprep.subr.mxu0 0.0
        %485 = vmatpush1.msra.mxu0 0.0
        %486 = vmatprep.subr.mxu0 0.0
        %487 = vmatpush1.msra.mxu0 0.0
        %488 = vmatprep.subr.mxu0 0.0
        %489 = vmatpush1.msra.mxu0 0.0
        %490 = vmatprep.subr.mxu0 0.0
        %491 = vmatpush1.msra.mxu0 0.0
        %492 = vmatprep.subr.mxu0 0.0
        %493 = vmatpush1.msra.mxu0 0.0
        %494 = vmatprep.subr.mxu0 0.0
        %495 = vmatpush1.msra.mxu0 0.0
        %496 = vmatprep.mubr.f32.mxu0 0.0
        %497 = vmatmul.mubr.f32.gmra.mrb[0].mxu0 %v430
        %v498 = vpop.f32.mrb[0].mxu0
        %v499 = vadd.f32 0.0, %v498
        %v500 = vpop.f32.mrb[0].mxu0
        %501 = vdwg.mxu0
        %v502 = vrcp.pop %v425
        %v503 = vmul.f32 %v499, %v502
        %504 = vrot.lane.b32.xlu0 %v328, 120
        %v505 = vpop.permute.xlu0 %504
        %506 = vrot.lane.b32.xlu0 %v325, 88
        %v507 = vpop.permute.xlu0 %506
        %v508 = vsel %vm341, %v505, 0
        %v510 = vsel %vm341, %v507, 0
        %512 = vmatprep.subr.mxu0 0.0
        %513 = vmatpush1.xpose.msra.mxu0 %v510
        %514 = vmatprep.subr.mxu0 0.0
        %515 = vmatpush1.xpose.msra.mxu0 0.0
        %516 = vmatprep.subr.mxu0 0.0
        %517 = vmatpush1.xpose.msra.mxu0 0.0
        %518 = vmatprep.subr.mxu0 0.0
        %519 = vmatpush1.xpose.msra.mxu0 0.0
        %520 = vmatprep.subr.mxu0 0.0
        %521 = vmatpush1.xpose.msra.mxu0 0.0
        %522 = vmatprep.subr.mxu0 0.0
        %523 = vmatpush1.xpose.msra.mxu0 0.0
        %524 = vmatprep.subr.mxu0 0.0
        %525 = vmatpush1.xpose.msra.mxu0 0.0
        %526 = vmatprep.subr.mxu0 0.0
        %527 = vmatpush1.xpose.msra.mxu0 0.0
        %528 = vmatprep.subr.mxu0 0.0
        %529 = vmatpush1.xpose.msra.mxu0 0.0
        %530 = vmatprep.subr.mxu0 0.0
        %531 = vmatpush1.xpose.msra.mxu0 0.0
        %532 = vmatprep.subr.mxu0 0.0
        %533 = vmatpush1.xpose.msra.mxu0 0.0
        %534 = vmatprep.subr.mxu0 0.0
        %535 = vmatpush1.xpose.msra.mxu0 0.0
        %536 = vmatprep.subr.mxu0 0.0
        %537 = vmatpush1.xpose.msra.mxu0 0.0
        %538 = vmatprep.subr.mxu0 0.0
        %539 = vmatpush1.xpose.msra.mxu0 0.0
        %540 = vmatprep.subr.mxu0 0.0
        %541 = vmatpush1.xpose.msra.mxu0 0.0
        %542 = vmatprep.subr.mxu0 0.0
        %543 = vmatpush1.xpose.msra.mxu0 0.0
        %544 = vmatprep.subr.mxu0 0.0
        %545 = vmatpush1.xpose.msra.mxu0 0.0
        %546 = vmatprep.subr.mxu0 0.0
        %547 = vmatpush1.xpose.msra.mxu0 0.0
        %548 = vmatprep.subr.mxu0 0.0
        %549 = vmatpush1.xpose.msra.mxu0 0.0
        %550 = vmatprep.subr.mxu0 0.0
        %551 = vmatpush1.xpose.msra.mxu0 0.0
        %552 = vmatprep.subr.mxu0 0.0
        %553 = vmatpush1.xpose.msra.mxu0 0.0
        %554 = vmatprep.subr.mxu0 0.0
        %555 = vmatpush1.xpose.msra.mxu0 0.0
        %556 = vmatprep.subr.mxu0 0.0
        %557 = vmatpush1.xpose.msra.mxu0 0.0
        %558 = vmatprep.subr.mxu0 0.0
        %559 = vmatpush1.xpose.msra.mxu0 0.0
        %560 = vmatprep.subr.mxu0 0.0
        %561 = vmatpush1.xpose.msra.mxu0 0.0
        %562 = vmatprep.subr.mxu0 0.0
        %563 = vmatpush1.xpose.msra.mxu0 0.0
        %564 = vmatprep.subr.mxu0 0.0
        %565 = vmatpush1.xpose.msra.mxu0 0.0
        %566 = vmatprep.subr.mxu0 0.0
        %567 = vmatpush1.xpose.msra.mxu0 0.0
        %568 = vmatprep.subr.mxu0 0.0
        %569 = vmatpush1.xpose.msra.mxu0 0.0
        %570 = vmatprep.subr.mxu0 0.0
        %571 = vmatpush1.xpose.msra.mxu0 0.0
        %572 = vmatprep.subr.mxu0 0.0
        %573 = vmatpush1.xpose.msra.mxu0 0.0
        %574 = vmatprep.subr.mxu0 0.0
        %575 = vmatpush1.xpose.msra.mxu0 0.0
        %576 = vmatprep.mubr.f32.mxu0 0.0
        %577 = vmatmul.mubr.f32.gmra.mrb[0].mxu0 %v508
        %v578 = vpop.f32.mrb[0].mxu0
        %v579 = vadd.f32 %v336, %v578
        %v580 = vpop.f32.mrb[0].mxu0
        %581 = vdwg.mxu0
        %v582 = vsel %vm341, %v579, -inf
        %583 = vmax.xlane.f32.xlu0 %v582
        %v584 = vpop.xlane.xlu0 %583
        %v585 = vsub.f32 %v579, %v584
        %v586 = vmul.f32 %v585, 1.442695
        %v587 = vpow.pop %v586
        %v588 = vsel %vm341, %v587, 0.0
        %589 = vadd.xlane.f32.xlu0 %v588
        %v590 = vpop.xlane.xlu0 %589
        %591 = vrot.lane.b32.xlu0 %v325, 56
        %v592 = vpop.permute.xlu0 %591
        %v595 = vsel %vm341, %v587, 0
        %597 = vmatprep.subr.mxu0 0.0
        %598 = vmatpush1.msra.mxu0 %v592
        %599 = vmatprep.subr.mxu0 0.0
        %600 = vmatpush1.msra.mxu0 0.0
        %601 = vmatprep.subr.mxu0 0.0
        %602 = vmatpush1.msra.mxu0 0.0
        %603 = vmatprep.subr.mxu0 0.0
        %604 = vmatpush1.msra.mxu0 0.0
        %605 = vmatprep.subr.mxu0 0.0
        %606 = vmatpush1.msra.mxu0 0.0
        %607 = vmatprep.subr.mxu0 0.0
        %608 = vmatpush1.msra.mxu0 0.0
        %609 = vmatprep.subr.mxu0 0.0
        %610 = vmatpush1.msra.mxu0 0.0
        %611 = vmatprep.subr.mxu0 0.0
        %612 = vmatpush1.msra.mxu0 0.0
        %613 = vmatprep.subr.mxu0 0.0
        %614 = vmatpush1.msra.mxu0 0.0
        %615 = vmatprep.subr.mxu0 0.0
        %616 = vmatpush1.msra.mxu0 0.0
        %617 = vmatprep.subr.mxu0 0.0
        %618 = vmatpush1.msra.mxu0 0.0
        %619 = vmatprep.subr.mxu0 0.0
        %620 = vmatpush1.msra.mxu0 0.0
        %621 = vmatprep.subr.mxu0 0.0
        %622 = vmatpush1.msra.mxu0 0.0
        %623 = vmatprep.subr.mxu0 0.0
        %624 = vmatpush1.msra.mxu0 0.0
        %625 = vmatprep.subr.mxu0 0.0
        %626 = vmatpush1.msra.mxu0 0.0
        %627 = vmatprep.subr.mxu0 0.0
        %628 = vmatpush1.msra.mxu0 0.0
        %629 = vmatprep.subr.mxu0 0.0
        %630 = vmatpush1.msra.mxu0 0.0
        %631 = vmatprep.subr.mxu0 0.0
        %632 = vmatpush1.msra.mxu0 0.0
        %633 = vmatprep.subr.mxu0 0.0
        %634 = vmatpush1.msra.mxu0 0.0
        %635 = vmatprep.subr.mxu0 0.0
        %636 = vmatpush1.msra.mxu0 0.0
        %637 = vmatprep.subr.mxu0 0.0
        %638 = vmatpush1.msra.mxu0 0.0
        %639 = vmatprep.subr.mxu0 0.0
        %640 = vmatpush1.msra.mxu0 0.0
        %641 = vmatprep.subr.mxu0 0.0
        %642 = vmatpush1.msra.mxu0 0.0
        %643 = vmatprep.subr.mxu0 0.0
        %644 = vmatpush1.msra.mxu0 0.0
        %645 = vmatprep.subr.mxu0 0.0
        %646 = vmatpush1.msra.mxu0 0.0
        %647 = vmatprep.subr.mxu0 0.0
        %648 = vmatpush1.msra.mxu0 0.0
        %649 = vmatprep.subr.mxu0 0.0
        %650 = vmatpush1.msra.mxu0 0.0
        %651 = vmatprep.subr.mxu0 0.0
        %652 = vmatpush1.msra.mxu0 0.0
        %653 = vmatprep.subr.mxu0 0.0
        %654 = vmatpush1.msra.mxu0 0.0
        %655 = vmatprep.subr.mxu0 0.0
        %656 = vmatpush1.msra.mxu0 0.0
        %657 = vmatprep.subr.mxu0 0.0
        %658 = vmatpush1.msra.mxu0 0.0
        %659 = vmatprep.subr.mxu0 0.0
        %660 = vmatpush1.msra.mxu0 0.0
        %661 = vmatprep.mubr.f32.mxu0 0.0
        %662 = vmatmul.mubr.f32.gmra.mrb[0].mxu0 %v595
        %v663 = vpop.f32.mrb[0].mxu0
        %v664 = vadd.f32 0.0, %v663
        %v665 = vpop.f32.mrb[0].mxu0
        %666 = vdwg.mxu0
        %v667 = vrcp.pop %v590
        %v668 = vmul.f32 %v664, %v667
        %669 = vrot.lane.b32.xlu0 %v328, 112
        %v670 = vpop.permute.xlu0 %669
        %671 = vrot.lane.b32.xlu0 %v325, 80
        %v672 = vpop.permute.xlu0 %671
        %v673 = vsel %vm341, %v670, 0
        %v675 = vsel %vm341, %v672, 0
        %677 = vmatprep.subr.mxu0 0.0
        %678 = vmatpush1.xpose.msra.mxu0 %v675
        %679 = vmatprep.subr.mxu0 0.0
        %680 = vmatpush1.xpose.msra.mxu0 0.0
        %681 = vmatprep.subr.mxu0 0.0
        %682 = vmatpush1.xpose.msra.mxu0 0.0
        %683 = vmatprep.subr.mxu0 0.0
        %684 = vmatpush1.xpose.msra.mxu0 0.0
        %685 = vmatprep.subr.mxu0 0.0
        %686 = vmatpush1.xpose.msra.mxu0 0.0
        %687 = vmatprep.subr.mxu0 0.0
        %688 = vmatpush1.xpose.msra.mxu0 0.0
        %689 = vmatprep.subr.mxu0 0.0
        %690 = vmatpush1.xpose.msra.mxu0 0.0
        %691 = vmatprep.subr.mxu0 0.0
        %692 = vmatpush1.xpose.msra.mxu0 0.0
        %693 = vmatprep.subr.mxu0 0.0
        %694 = vmatpush1.xpose.msra.mxu0 0.0
        %695 = vmatprep.subr.mxu0 0.0
        %696 = vmatpush1.xpose.msra.mxu0 0.0
        %697 = vmatprep.subr.mxu0 0.0
        %698 = vmatpush1.xpose.msra.mxu0 0.0
        %699 = vmatprep.subr.mxu0 0.0
        %700 = vmatpush1.xpose.msra.mxu0 0.0
        %701 = vmatprep.subr.mxu0 0.0
        %702 = vmatpush1.xpose.msra.mxu0 0.0
        %703 = vmatprep.subr.mxu0 0.0
        %704 = vmatpush1.xpose.msra.mxu0 0.0
        %705 = vmatprep.subr.mxu0 0.0
        %706 = vmatpush1.xpose.msra.mxu0 0.0
        %707 = vmatprep.subr.mxu0 0.0
        %708 = vmatpush1.xpose.msra.mxu0 0.0
        %709 = vmatprep.subr.mxu0 0.0
        %710 = vmatpush1.xpose.msra.mxu0 0.0
        %711 = vmatprep.subr.mxu0 0.0
        %712 = vmatpush1.xpose.msra.mxu0 0.0
        %713 = vmatprep.subr.mxu0 0.0
        %714 = vmatpush1.xpose.msra.mxu0 0.0
        %715 = vmatprep.subr.mxu0 0.0
        %716 = vmatpush1.xpose.msra.mxu0 0.0
        %717 = vmatprep.subr.mxu0 0.0
        %718 = vmatpush1.xpose.msra.mxu0 0.0
        %719 = vmatprep.subr.mxu0 0.0
        %720 = vmatpush1.xpose.msra.mxu0 0.0
        %721 = vmatprep.subr.mxu0 0.0
        %722 = vmatpush1.xpose.msra.mxu0 0.0
        %723 = vmatprep.subr.mxu0 0.0
        %724 = vmatpush1.xpose.msra.mxu0 0.0
        %725 = vmatprep.subr.mxu0 0.0
        %726 = vmatpush1.xpose.msra.mxu0 0.0
        %727 = vmatprep.subr.mxu0 0.0
        %728 = vmatpush1.xpose.msra.mxu0 0.0
        %729 = vmatprep.subr.mxu0 0.0
        %730 = vmatpush1.xpose.msra.mxu0 0.0
        %731 = vmatprep.subr.mxu0 0.0
        %732 = vmatpush1.xpose.msra.mxu0 0.0
        %733 = vmatprep.subr.mxu0 0.0
        %734 = vmatpush1.xpose.msra.mxu0 0.0
        %735 = vmatprep.subr.mxu0 0.0
        %736 = vmatpush1.xpose.msra.mxu0 0.0
        %737 = vmatprep.subr.mxu0 0.0
        %738 = vmatpush1.xpose.msra.mxu0 0.0
        %739 = vmatprep.subr.mxu0 0.0
        %740 = vmatpush1.xpose.msra.mxu0 0.0
        %741 = vmatprep.mubr.f32.mxu0 0.0
        %742 = vmatmul.mubr.f32.gmra.mrb[0].mxu0 %v673
        %v743 = vpop.f32.mrb[0].mxu0
        %v744 = vadd.f32 %v336, %v743
        %v745 = vpop.f32.mrb[0].mxu0
        %746 = vdwg.mxu0
        %v747 = vsel %vm341, %v744, -inf
        %748 = vmax.xlane.f32.xlu0 %v747
        %v749 = vpop.xlane.xlu0 %748
        %v750 = vsub.f32 %v744, %v749
        %v751 = vmul.f32 %v750, 1.442695
        %v752 = vpow.pop %v751
        %v753 = vsel %vm341, %v752, 0.0
        %754 = vadd.xlane.f32.xlu0 %v753
        %v755 = vpop.xlane.xlu0 %754
        %756 = vrot.lane.b32.xlu0 %v325, 48
        %v757 = vpop.permute.xlu0 %756
        %v760 = vsel %vm341, %v752, 0
        %762 = vmatprep.subr.mxu0 0.0
        %763 = vmatpush1.msra.mxu0 %v757
        %764 = vmatprep.subr.mxu0 0.0
        %765 = vmatpush1.msra.mxu0 0.0
        %766 = vmatprep.subr.mxu0 0.0
        %767 = vmatpush1.msra.mxu0 0.0
        %768 = vmatprep.subr.mxu0 0.0
        %769 = vmatpush1.msra.mxu0 0.0
        %770 = vmatprep.subr.mxu0 0.0
        %771 = vmatpush1.msra.mxu0 0.0
        %772 = vmatprep.subr.mxu0 0.0
        %773 = vmatpush1.msra.mxu0 0.0
        %774 = vmatprep.subr.mxu0 0.0
        %775 = vmatpush1.msra.mxu0 0.0
        %776 = vmatprep.subr.mxu0 0.0
        %777 = vmatpush1.msra.mxu0 0.0
        %778 = vmatprep.subr.mxu0 0.0
        %779 = vmatpush1.msra.mxu0 0.0
        %780 = vmatprep.subr.mxu0 0.0
        %781 = vmatpush1.msra.mxu0 0.0
        %782 = vmatprep.subr.mxu0 0.0
        %783 = vmatpush1.msra.mxu0 0.0
        %784 = vmatprep.subr.mxu0 0.0
        %785 = vmatpush1.msra.mxu0 0.0
        %786 = vmatprep.subr.mxu0 0.0
        %787 = vmatpush1.msra.mxu0 0.0
        %788 = vmatprep.subr.mxu0 0.0
        %789 = vmatpush1.msra.mxu0 0.0
        %790 = vmatprep.subr.mxu0 0.0
        %791 = vmatpush1.msra.mxu0 0.0
        %792 = vmatprep.subr.mxu0 0.0
        %793 = vmatpush1.msra.mxu0 0.0
        %794 = vmatprep.subr.mxu0 0.0
        %795 = vmatpush1.msra.mxu0 0.0
        %796 = vmatprep.subr.mxu0 0.0
        %797 = vmatpush1.msra.mxu0 0.0
        %798 = vmatprep.subr.mxu0 0.0
        %799 = vmatpush1.msra.mxu0 0.0
        %800 = vmatprep.subr.mxu0 0.0
        %801 = vmatpush1.msra.mxu0 0.0
        %802 = vmatprep.subr.mxu0 0.0
        %803 = vmatpush1.msra.mxu0 0.0
        %804 = vmatprep.subr.mxu0 0.0
        %805 = vmatpush1.msra.mxu0 0.0
        %806 = vmatprep.subr.mxu0 0.0
        %807 = vmatpush1.msra.mxu0 0.0
        %808 = vmatprep.subr.mxu0 0.0
        %809 = vmatpush1.msra.mxu0 0.0
        %810 = vmatprep.subr.mxu0 0.0
        %811 = vmatpush1.msra.mxu0 0.0
        %812 = vmatprep.subr.mxu0 0.0
        %813 = vmatpush1.msra.mxu0 0.0
        %814 = vmatprep.subr.mxu0 0.0
        %815 = vmatpush1.msra.mxu0 0.0
        %816 = vmatprep.subr.mxu0 0.0
        %817 = vmatpush1.msra.mxu0 0.0
        %818 = vmatprep.subr.mxu0 0.0
        %819 = vmatpush1.msra.mxu0 0.0
        %820 = vmatprep.subr.mxu0 0.0
        %821 = vmatpush1.msra.mxu0 0.0
        %822 = vmatprep.subr.mxu0 0.0
        %823 = vmatpush1.msra.mxu0 0.0
        %824 = vmatprep.subr.mxu0 0.0
        %825 = vmatpush1.msra.mxu0 0.0
        %826 = vmatprep.mubr.f32.mxu0 0.0
        %827 = vmatmul.mubr.f32.gmra.mrb[0].mxu0 %v760
        %v828 = vpop.f32.mrb[0].mxu0
        %v829 = vadd.f32 0.0, %v828
        %v830 = vpop.f32.mrb[0].mxu0
        %831 = vdwg.mxu0
        %v832 = vrcp.pop %v755
        %v833 = vmul.f32 %v829, %v832
        %834 = vrot.lane.b32.xlu0 %v328, 104
        %v835 = vpop.permute.xlu0 %834
        %836 = vrot.lane.b32.xlu0 %v325, 72
        %v837 = vpop.permute.xlu0 %836
        %v838 = vsel %vm341, %v835, 0
        %v840 = vsel %vm341, %v837, 0
        %842 = vmatprep.subr.mxu0 0.0
        %843 = vmatpush1.xpose.msra.mxu0 %v840
        %844 = vmatprep.subr.mxu0 0.0
        %845 = vmatpush1.xpose.msra.mxu0 0.0
        %846 = vmatprep.subr.mxu0 0.0
        %847 = vmatpush1.xpose.msra.mxu0 0.0
        %848 = vmatprep.subr.mxu0 0.0
        %849 = vmatpush1.xpose.msra.mxu0 0.0
        %850 = vmatprep.subr.mxu0 0.0
        %851 = vmatpush1.xpose.msra.mxu0 0.0
        %852 = vmatprep.subr.mxu0 0.0
        %853 = vmatpush1.xpose.msra.mxu0 0.0
        %854 = vmatprep.subr.mxu0 0.0
        %855 = vmatpush1.xpose.msra.mxu0 0.0
        %856 = vmatprep.subr.mxu0 0.0
        %857 = vmatpush1.xpose.msra.mxu0 0.0
        %858 = vmatprep.subr.mxu0 0.0
        %859 = vmatpush1.xpose.msra.mxu0 0.0
        %860 = vmatprep.subr.mxu0 0.0
        %861 = vmatpush1.xpose.msra.mxu0 0.0
        %862 = vmatprep.subr.mxu0 0.0
        %863 = vmatpush1.xpose.msra.mxu0 0.0
        %864 = vmatprep.subr.mxu0 0.0
        %865 = vmatpush1.xpose.msra.mxu0 0.0
        %866 = vmatprep.subr.mxu0 0.0
        %867 = vmatpush1.xpose.msra.mxu0 0.0
        %868 = vmatprep.subr.mxu0 0.0
        %869 = vmatpush1.xpose.msra.mxu0 0.0
        %870 = vmatprep.subr.mxu0 0.0
        %871 = vmatpush1.xpose.msra.mxu0 0.0
        %872 = vmatprep.subr.mxu0 0.0
        %873 = vmatpush1.xpose.msra.mxu0 0.0
        %874 = vmatprep.subr.mxu0 0.0
        %875 = vmatpush1.xpose.msra.mxu0 0.0
        %876 = vmatprep.subr.mxu0 0.0
        %877 = vmatpush1.xpose.msra.mxu0 0.0
        %878 = vmatprep.subr.mxu0 0.0
        %879 = vmatpush1.xpose.msra.mxu0 0.0
        %880 = vmatprep.subr.mxu0 0.0
        %881 = vmatpush1.xpose.msra.mxu0 0.0
        %882 = vmatprep.subr.mxu0 0.0
        %883 = vmatpush1.xpose.msra.mxu0 0.0
        %884 = vmatprep.subr.mxu0 0.0
        %885 = vmatpush1.xpose.msra.mxu0 0.0
        %886 = vmatprep.subr.mxu0 0.0
        %887 = vmatpush1.xpose.msra.mxu0 0.0
        %888 = vmatprep.subr.mxu0 0.0
        %889 = vmatpush1.xpose.msra.mxu0 0.0
        %890 = vmatprep.subr.mxu0 0.0
        %891 = vmatpush1.xpose.msra.mxu0 0.0
        %892 = vmatprep.subr.mxu0 0.0
        %893 = vmatpush1.xpose.msra.mxu0 0.0
        %894 = vmatprep.subr.mxu0 0.0
        %895 = vmatpush1.xpose.msra.mxu0 0.0
        %896 = vmatprep.subr.mxu0 0.0
        %897 = vmatpush1.xpose.msra.mxu0 0.0
        %898 = vmatprep.subr.mxu0 0.0
        %899 = vmatpush1.xpose.msra.mxu0 0.0
        %900 = vmatprep.subr.mxu0 0.0
        %901 = vmatpush1.xpose.msra.mxu0 0.0
        %902 = vmatprep.subr.mxu0 0.0
        %903 = vmatpush1.xpose.msra.mxu0 0.0
        %904 = vmatprep.subr.mxu0 0.0
        %905 = vmatpush1.xpose.msra.mxu0 0.0
        %906 = vmatprep.mubr.f32.mxu0 0.0
        %907 = vmatmul.mubr.f32.gmra.mrb[0].mxu0 %v838
        %v908 = vpop.f32.mrb[0].mxu0
        %v909 = vadd.f32 %v336, %v908
        %v910 = vpop.f32.mrb[0].mxu0
        %911 = vdwg.mxu0
        %v912 = vsel %vm341, %v909, -inf
        %913 = vmax.xlane.f32.xlu0 %v912
        %v914 = vpop.xlane.xlu0 %913
        %v915 = vsub.f32 %v909, %v914
        %v916 = vmul.f32 %v915, 1.442695
        %v917 = vpow.pop %v916
        %v918 = vsel %vm341, %v917, 0.0
        %919 = vadd.xlane.f32.xlu0 %v918
        %v920 = vpop.xlane.xlu0 %919
        %921 = vrot.lane.b32.xlu0 %v325, 40
        %v922 = vpop.permute.xlu0 %921
        %v925 = vsel %vm341, %v917, 0
        %927 = vmatprep.subr.mxu0 0.0
        %928 = vmatpush1.msra.mxu0 %v922
        %929 = vmatprep.subr.mxu0 0.0
        %930 = vmatpush1.msra.mxu0 0.0
        %931 = vmatprep.subr.mxu0 0.0
        %932 = vmatpush1.msra.mxu0 0.0
        %933 = vmatprep.subr.mxu0 0.0
        %934 = vmatpush1.msra.mxu0 0.0
        %935 = vmatprep.subr.mxu0 0.0
        %936 = vmatpush1.msra.mxu0 0.0
        %937 = vmatprep.subr.mxu0 0.0
        %938 = vmatpush1.msra.mxu0 0.0
        %939 = vmatprep.subr.mxu0 0.0
        %940 = vmatpush1.msra.mxu0 0.0
        %941 = vmatprep.subr.mxu0 0.0
        %942 = vmatpush1.msra.mxu0 0.0
        %943 = vmatprep.subr.mxu0 0.0
        %944 = vmatpush1.msra.mxu0 0.0
        %945 = vmatprep.subr.mxu0 0.0
        %946 = vmatpush1.msra.mxu0 0.0
        %947 = vmatprep.subr.mxu0 0.0
        %948 = vmatpush1.msra.mxu0 0.0
        %949 = vmatprep.subr.mxu0 0.0
        %950 = vmatpush1.msra.mxu0 0.0
        %951 = vmatprep.subr.mxu0 0.0
        %952 = vmatpush1.msra.mxu0 0.0
        %953 = vmatprep.subr.mxu0 0.0
        %954 = vmatpush1.msra.mxu0 0.0
        %955 = vmatprep.subr.mxu0 0.0
        %956 = vmatpush1.msra.mxu0 0.0
        %957 = vmatprep.subr.mxu0 0.0
        %958 = vmatpush1.msra.mxu0 0.0
        %959 = vmatprep.subr.mxu0 0.0
        %960 = vmatpush1.msra.mxu0 0.0
        %961 = vmatprep.subr.mxu0 0.0
        %962 = vmatpush1.msra.mxu0 0.0
        %963 = vmatprep.subr.mxu0 0.0
        %964 = vmatpush1.msra.mxu0 0.0
        %965 = vmatprep.subr.mxu0 0.0
        %966 = vmatpush1.msra.mxu0 0.0
        %967 = vmatprep.subr.mxu0 0.0
        %968 = vmatpush1.msra.mxu0 0.0
        %969 = vmatprep.subr.mxu0 0.0
        %970 = vmatpush1.msra.mxu0 0.0
        %971 = vmatprep.subr.mxu0 0.0
        %972 = vmatpush1.msra.mxu0 0.0
        %973 = vmatprep.subr.mxu0 0.0
        %974 = vmatpush1.msra.mxu0 0.0
        %975 = vmatprep.subr.mxu0 0.0
        %976 = vmatpush1.msra.mxu0 0.0
        %977 = vmatprep.subr.mxu0 0.0
        %978 = vmatpush1.msra.mxu0 0.0
        %979 = vmatprep.subr.mxu0 0.0
        %980 = vmatpush1.msra.mxu0 0.0
        %981 = vmatprep.subr.mxu0 0.0
        %982 = vmatpush1.msra.mxu0 0.0
        %983 = vmatprep.subr.mxu0 0.0
        %984 = vmatpush1.msra.mxu0 0.0
        %985 = vmatprep.subr.mxu0 0.0
        %986 = vmatpush1.msra.mxu0 0.0
        %987 = vmatprep.subr.mxu0 0.0
        %988 = vmatpush1.msra.mxu0 0.0
        %989 = vmatprep.subr.mxu0 0.0
        %990 = vmatpush1.msra.mxu0 0.0
        %991 = vmatprep.mubr.f32.mxu0 0.0
        %992 = vmatmul.mubr.f32.gmra.mrb[0].mxu0 %v925
        %v993 = vpop.f32.mrb[0].mxu0
        %v994 = vadd.f32 0.0, %v993
        %v995 = vpop.f32.mrb[0].mxu0
        %996 = vdwg.mxu0
        %v997 = vrcp.pop %v920
        %v998 = vmul.f32 %v994, %v997
        %1000 = vrot.lane.b32.xlu0 %v668, 8
        %v1001 = vpop.permute.xlu0 %1000
        %1004 = vrot.lane.b32.xlu0 %v833, 16
        %v1005 = vpop.permute.xlu0 %1004
        %1008 = vrot.lane.b32.xlu0 %v998, 24
        %v1009 = vpop.permute.xlu0 %1008
        %v1011 = vsel %vm341, %v503, %v1001
        %vm1012 = vcmask 130048
        %v1013 = vsel %vm1012, %v1011, %v1005
        %vm1014 = vcmask 195584
        %v1015 = vsel %vm1014, %v1013, %v1009
        %1016 = vst.msk [vmem:[%s238] sm:$0xff] %vm254, %v1015
        %s1017 = sand.u32 %s124, 1
        %s1018 = scalar_lea.sflag [#allocation4], %s1017
        %s1019 = sand.u32 %s124, 1
        %s1020 = smul.addr %s1019, 8
        %s1021 = scalar_lea.vmem [#allocation7], %s1020
        // Predicated region
        $region45: #{tpu_custom_call.1} parent=35 // pred_check
          %p1022 = pneg %p134
        $region46: #{tpu_custom_call.1} parent=35 // pred_check_branch
          %1024 = sbr.rel (%p1022) target = $region48
        $region47: #{tpu_custom_call.1} parent=35 // pred_region
          %s1026 = ssub.s32 128, 128
          %1027 = vsyncadd %s1018, %s1026
          %s1028 = smul.addr %s22, 128
          %s1029 = scalar_lea.hbm %s4, %s1028
          %s1031 = sshll.u32 %s1021, 4
          %s1032 = int_to_ptr.vmem [resolvable:$true] %s1031
          %1034 = dma.vmem_to_hbm [thread:$0]  %s1032, 128, %s1029, %s1018
        $region48: #{tpu_custom_call.1} parent=35 // pred_fallthru
          _
      $region36: #{tpu_custom_call.1} parent=5 // pred_fallthru
        _
      %p1035 = scmp.le.s32.totalorder 2, %s17
      // Predicated region
      $region49: #{tpu_custom_call.1} parent=5 // pred_check
        %p1036 = pneg %p1035
      $region50: #{tpu_custom_call.1} parent=5 // pred_check_branch
        %1038 = sbr.rel (%p1036) target = $region52
      $region51: #{tpu_custom_call.1} parent=5 // pred_region
        %s1039 = ssub.s32 %s17, 2
        // Predicated region
        $region53: #{tpu_custom_call.1} parent=51 // pred_check
          %p1040 = pneg %p140
        $region54: #{tpu_custom_call.1} parent=51 // pred_check_branch
          %1042 = sbr.rel (%p1040) target = $region56
        $region55: #{tpu_custom_call.1} parent=51 // pred_region
          %s1043 = sand.u32 %s125, 1
          %s1044 = scalar_lea.sflag [#allocation4], %s1043
          %s1045 = sand.u32 %s125, 1
          %s1046 = smul.addr %s1045, 8
          %s1047 = scalar_lea.vmem [#allocation7], %s1046
          %1048 = dma.done %s1044, 128
        $region56: #{tpu_custom_call.1} parent=51 // pred_fallthru
          _
      $region52: #{tpu_custom_call.1} parent=5 // pred_fallthru
        _
    $region6: #{tpu_custom_call.1} parent=1 // loop_footer
      %s21 = sadd.s32 1, %s17
    $region7: #{tpu_custom_call.1} parent=1 // loop_footer_branch
      %16 = sbr.rel target = $region3
    $region8: #{tpu_custom_call.1} parent=1 // loop_exit
      _
    %1049 = vsyncpa [#allocation3], 1
    %s1050 = scalar_lea.sflag [#allocation3], 1
    %1051 = vsyncpa %s1050, 1
    %1052 = vsyncpa [#allocation6], 1
    %1053 = vsyncpa [#allocation4], 1
    %s1054 = scalar_lea.sflag [#allocation4], 1
    %1055 = vsyncpa %s1054, 1

</llo_original>
